<compile_context>
chip_gen: v7x
topology: tpu7x:2x2x1
jax: 0.10.0
libtpu: 0.0.40
codegen_flags: <defaults>
</compile_context>

<pallas_src>
import jax
import jax.numpy as jnp
from jax.experimental import pallas as pl
from jax.experimental.pallas import tpu as pltpu

P_FEATURES = 16     # Dry Bean dataset: 16 numeric features
HIDDEN_DIM = 32     # config['hidden_dim'] (chosen small, deterministic)
NUM_CLASSES = 7     # 7 bean classes

# Max rows per grid step. Padded VMEM footprint per step (double buffered):
#   x  : 2 * TILE * 128 lanes * 4 B (f32) = 16 MiB at TILE=16384
#   out: 2 * TILE * 128 lanes * 4 B (f32) = 16 MiB at TILE=16384
# -> ~32 MiB + tiny weights: safe under the explicit 48 MiB scoped limit on
#    every generation (v5e/v6e 128 MiB, v7x 64 MiB physical VMEM).
MAX_TILE = 16384
ROW_ALIGN = 8       # f32 sublane granularity for the batch-row block dim


def _round_up(x, m):
    return ((x + m - 1) // m) * m


def _choose_tile(n):
    """Pick a batch tile: >=2 grid blocks for medium batches (v7x dual-TC),
    capped at MAX_TILE, always a multiple of ROW_ALIGN."""
    if n <= 2 * MAX_TILE:
        tile = _round_up(max((n + 1) // 2, 1), ROW_ALIGN)
    else:
        tile = MAX_TILE
    return max(ROW_ALIGN, min(tile, MAX_TILE))


def _mlp_logsoftmax_kernel(x_ref, w1_ref, b1_ref, w2_ref, b2_ref, o_ref):
    # One (tile, 16) batch block; both matmuls, ReLU and the row-wise
    # log_softmax are fused. MXU operands are bf16 (f32 accumulation);
    # bias add / ReLU / softmax epilogue are f32.
    x = x_ref[...].astype(jnp.bfloat16)                               # (tile, p)
    h = jnp.dot(x, w1_ref[...], preferred_element_type=jnp.float32)   # (tile, dim) f32
    h = jnp.maximum(h + b1_ref[...], 0.0)                             # bias + ReLU (f32)
    logits = jnp.dot(h.astype(jnp.bfloat16), w2_ref[...],
                     preferred_element_type=jnp.float32)              # (tile, 7) f32
    logits = logits + b2_ref[...]
    # Numerically stable log_softmax along dim=1 (last axis).
    m = jnp.max(logits, axis=-1, keepdims=True)
    z = logits - m
    lse = jnp.log(jnp.sum(jnp.exp(z), axis=-1, keepdims=True))
    o_ref[...] = (z - lse).astype(o_ref.dtype)


def bayesian_network_forward(x, w1, b1, w2, b2):
    """Deterministic (sample=False) forward of BayesianNetwork.

    x  : (..., p) float32   (flattened to (-1, p) like x.view(-1, p))
    w1 : (p, dim) float32   -- already transposed from PyTorch's (dim, p)
    b1 : (1, dim) float32
    w2 : (dim, 7) float32   -- already transposed from PyTorch's (7, dim)
    b2 : (1, 7)   float32
    returns: (N, 7) float32 log-probabilities
    """
    x = x.reshape(-1, P_FEATURES)          # mirrors x.view(-1, p); no HBM pass
    n = x.shape[0]

    # Weights are O(1) data: cast once to bf16 so the MXU gets bf16 operands.
    # (Inputs stay f32 in HBM; casting the activations happens in-kernel.)
    w1 = w1.astype(jnp.bfloat16)
    w2 = w2.astype(jnp.bfloat16)

    tile = _choose_tile(n)
    grid = (pl.cdiv(n, tile),)             # partial last block handled by Pallas

    const = lambda shape: pl.BlockSpec(shape, lambda i: tuple(0 for _ in shape))

    out = pl.pallas_call(
        _mlp_logsoftmax_kernel,
        out_shape=jax.ShapeDtypeStruct((n, NUM_CLASSES), jnp.float32),
        grid=grid,
        in_specs=[
            pl.BlockSpec((tile, P_FEATURES), lambda i: (i, 0)),   # x: tiled over batch
            const(w1.shape),                                      # weights stay VMEM-resident
            const(b1.shape),
            const(w2.shape),
            const(b2.shape),
        ],
        out_specs=pl.BlockSpec((tile, NUM_CLASSES), lambda i: (i, 0)),
        compiler_params=pltpu.CompilerParams(
            dimension_semantics=("parallel",),
            vmem_limit_bytes=48 * 1024 * 1024,
        ),
    )(x, w1, b1, w2, b2)

    return out


def init_params(key):
    """Deterministic init of the mean (mu) parameters of the two BayesianLinear layers."""
    k1, k2, k3, k4 = jax.random.split(key, 4)
    bound1 = 1.0 / jnp.sqrt(P_FEATURES)
    bound2 = 1.0 / jnp.sqrt(HIDDEN_DIM)
    w1 = jax.random.uniform(k1, (P_FEATURES, HIDDEN_DIM), jnp.float32, -bound1, bound1)
    b1 = jax.random.uniform(k2, (1, HIDDEN_DIM), jnp.float32, -bound1, bound1)
    w2 = jax.random.uniform(k3, (HIDDEN_DIM, NUM_CLASSES), jnp.float32, -bound2, bound2)
    b2 = jax.random.uniform(k4, (1, NUM_CLASSES), jnp.float32, -bound2, bound2)
    return w1, b1, w2, b2


def reference_forward(x, w1, b1, w2, b2):
    # Mirrors the kernel's bf16 MXU operands (f32 accumulation, f32 epilogue).
    # NOTE: this is a deliberate, documented fidelity deviation from pure-f32
    # PyTorch matmuls; with K=16/32 and f32 accumulation the error is ~1e-3.
    x = x.reshape(-1, P_FEATURES)
    xb = x.astype(jnp.bfloat16)
    w1b = w1.astype(jnp.bfloat16)
    w2b = w2.astype(jnp.bfloat16)
    h = jnp.dot(xb, w1b, preferred_element_type=jnp.float32) + b1
    h = jnp.maximum(h, 0.0)
    logits = jnp.dot(h.astype(jnp.bfloat16), w2b, preferred_element_type=jnp.float32) + b2
    return jax.nn.log_softmax(logits, axis=1)


if __name__ == "__main__":
    key = jax.random.PRNGKey(0)
    kx, kp = jax.random.split(key)
    batch = 8
    x = jax.random.normal(kx, (batch, P_FEATURES), jnp.float32)
    w1, b1, w2, b2 = init_params(kp)

    out = bayesian_network_forward(x, w1, b1, w2, b2)
    out = jax.block_until_ready(out)

    ref = reference_forward(x, w1, b1, w2, b2)
    assert out.shape == (batch, NUM_CLASSES)
    assert jnp.allclose(out, ref, atol=1e-3, rtol=1e-3), "mismatch vs pure-JAX reference"
    # rows of log_softmax should exp-sum to 1
    assert jnp.allclose(jnp.exp(out).sum(axis=1), 1.0, atol=1e-4)

    # also exercise a ragged batch (partial last block, 2-block grid)
    x2 = jax.random.normal(kx, (37, P_FEATURES), jnp.float32)
    out2 = jax.block_until_ready(bayesian_network_forward(x2, w1, b1, w2, b2))
    ref2 = reference_forward(x2, w1, b1, w2, b2)
    assert out2.shape == (37, NUM_CLASSES)
    assert jnp.allclose(out2, ref2, atol=1e-3, rtol=1e-3), "mismatch on ragged batch"
    assert jnp.allclose(jnp.exp(out2).sum(axis=1), 1.0, atol=1e-4)

    print("KERNEL_OK")
</pallas_src>

<mosaic_0001>
module attributes {stable_mosaic.version = 11 : i64} {
  func.func @_mlp_logsoftmax_kernel(%arg0: i32, %arg1: memref<8x16xf32, #tpu.memory_space<vmem>>, %arg2: memref<16x32xbf16, #tpu.memory_space<vmem>>, %arg3: memref<1x32xf32, #tpu.memory_space<vmem>>, %arg4: memref<32x7xbf16, #tpu.memory_space<vmem>>, %arg5: memref<1x7xf32, #tpu.memory_space<vmem>>, %arg6: memref<8x7xf32, #tpu.memory_space<vmem>>) attributes {dimension_semantics = [#tpu.dimension_semantics<parallel>], iteration_bounds = array<i64: 1>, scalar_prefetch = 0 : i64, scratch_operands = 0 : i64, tpu.core_type = #tpu.core_type<tc>, window_params = [{transform_indices = @transform_0, window_bounds = array<i64: 8, 16>}, {pipeline_mode = #tpu.pipeline_mode<synchronous>, transform_indices = @transform_1, window_bounds = array<i64: 16, 32>}, {pipeline_mode = #tpu.pipeline_mode<synchronous>, transform_indices = @transform_2, window_bounds = array<i64: 1, 32>}, {pipeline_mode = #tpu.pipeline_mode<synchronous>, transform_indices = @transform_3, window_bounds = array<i64: 32, 7>}, {pipeline_mode = #tpu.pipeline_mode<synchronous>, transform_indices = @transform_4, window_bounds = array<i64: 1, 7>}, {transform_indices = @transform_5, window_bounds = array<i64: 8, 7>}]} {
    %c0 = arith.constant 0 : index
    %c0_0 = arith.constant 0 : index
    %0 = vector.load %arg1[%c0, %c0_0] : memref<8x16xf32, #tpu.memory_space<vmem>>, vector<8x16xf32>
    %1 = arith.truncf %0 : vector<8x16xf32> to vector<8x16xbf16>
    %c0_1 = arith.constant 0 : index
    %c0_2 = arith.constant 0 : index
    %2 = vector.load %arg2[%c0_1, %c0_2] : memref<16x32xbf16, #tpu.memory_space<vmem>>, vector<16x32xbf16>
    %cst = arith.constant dense<0.000000e+00> : vector<8x32xf32>
    %3 = tpu.matmul %1, %2, %cst {dimension_numbers = #tpu.dot_dimension_numbers<[1], [0], [0], [1], [0, 0, 1, 1], [], []>} : vector<8x16xbf16>, vector<16x32xbf16>, vector<8x32xf32> -> vector<8x32xf32>
    %c0_3 = arith.constant 0 : index
    %c0_4 = arith.constant 0 : index
    %4 = vector.load %arg3[%c0_3, %c0_4] : memref<1x32xf32, #tpu.memory_space<vmem>>, vector<1x32xf32>
    %5 = vector.broadcast %4 : vector<1x32xf32> to vector<8x32xf32>
    %6 = arith.addf %3, %5 : vector<8x32xf32>
    %cst_5 = arith.constant 0.000000e+00 : f32
    %7 = vector.broadcast %cst_5 : f32 to vector<8x32xf32>
    %8 = arith.maximumf %6, %7 : vector<8x32xf32>
    %9 = arith.truncf %8 : vector<8x32xf32> to vector<8x32xbf16>
    %c0_6 = arith.constant 0 : index
    %c0_7 = arith.constant 0 : index
    %10 = vector.load %arg4[%c0_6, %c0_7] : memref<32x7xbf16, #tpu.memory_space<vmem>>, vector<32x7xbf16>
    %cst_8 = arith.constant dense<0.000000e+00> : vector<8x7xf32>
    %11 = tpu.matmul %9, %10, %cst_8 {dimension_numbers = #tpu.dot_dimension_numbers<[1], [0], [0], [1], [0, 0, 1, 1], [], []>} : vector<8x32xbf16>, vector<32x7xbf16>, vector<8x7xf32> -> vector<8x7xf32>
    %c0_9 = arith.constant 0 : index
    %c0_10 = arith.constant 0 : index
    %12 = vector.load %arg5[%c0_9, %c0_10] : memref<1x7xf32, #tpu.memory_space<vmem>>, vector<1x7xf32>
    %13 = vector.broadcast %12 : vector<1x7xf32> to vector<8x7xf32>
    %14 = arith.addf %11, %13 : vector<8x7xf32>
    %cst_11 = arith.constant dense<0xFF800000> : vector<8xf32>
    %15 = vector.multi_reduction <maximumf>, %14, %cst_11 [1] : vector<8x7xf32> to vector<8xf32>
    %16 = vector.shape_cast %15 : vector<8xf32> to vector<8x1xf32>
    %17 = vector.broadcast %16 : vector<8x1xf32> to vector<8x7xf32>
    %18 = arith.subf %14, %17 : vector<8x7xf32>
    %19 = math.exp %18 : vector<8x7xf32>
    %cst_12 = arith.constant dense<0.000000e+00> : vector<8xf32>
    %20 = vector.multi_reduction <add>, %19, %cst_12 [1] : vector<8x7xf32> to vector<8xf32>
    %21 = vector.shape_cast %20 : vector<8xf32> to vector<8x1xf32>
    %22 = math.log %21 : vector<8x1xf32>
    %23 = vector.broadcast %22 : vector<8x1xf32> to vector<8x7xf32>
    %24 = arith.subf %18, %23 : vector<8x7xf32>
    %c0_13 = arith.constant 0 : index
    %c0_14 = arith.constant 0 : index
    %25 = vector.load %arg6[%c0_13, %c0_14] : memref<8x7xf32, #tpu.memory_space<vmem>>, vector<8x7xf32>
    tpu.vector_store %arg6[%c0_13, %c0_14], %24 {strides = array<i32>} : memref<8x7xf32, #tpu.memory_space<vmem>>, vector<8x7xf32>,
    return
  }
  func.func @transform_0(%arg0: i32) -> (i32, i32) {
    %c0_i32 = arith.constant 0 : i32
    %c0_i32_0 = arith.constant 0 : i32
    return %arg0, %c0_i32 : i32, i32
  }
  func.func @transform_1(%arg0: i32) -> (i32, i32) {
    %c0_i32 = arith.constant 0 : i32
    %c0_i32_0 = arith.constant 0 : i32
    %c0_i32_1 = arith.constant 0 : i32
    return %c0_i32, %c0_i32_0 : i32, i32
  }
  func.func @transform_2(%arg0: i32) -> (i32, i32) {
    %c0_i32 = arith.constant 0 : i32
    %c0_i32_0 = arith.constant 0 : i32
    %c0_i32_1 = arith.constant 0 : i32
    return %c0_i32, %c0_i32_0 : i32, i32
  }
  func.func @transform_3(%arg0: i32) -> (i32, i32) {
    %c0_i32 = arith.constant 0 : i32
    %c0_i32_0 = arith.constant 0 : i32
    %c0_i32_1 = arith.constant 0 : i32
    return %c0_i32, %c0_i32_0 : i32, i32
  }
  func.func @transform_4(%arg0: i32) -> (i32, i32) {
    %c0_i32 = arith.constant 0 : i32
    %c0_i32_0 = arith.constant 0 : i32
    %c0_i32_1 = arith.constant 0 : i32
    return %c0_i32, %c0_i32_0 : i32, i32
  }
  func.func @transform_5(%arg0: i32) -> (i32, i32) {
    %c0_i32 = arith.constant 0 : i32
    %c0_i32_0 = arith.constant 0 : i32
    return %arg0, %c0_i32 : i32, i32
  }
}

</mosaic_0001>

<llo_original>
// kernel: tpu_custom_call.1
$region0: #{tpu_custom_call.1}
  #allocation0 [shape = 'u32[]', space=smem, size = 0x4, offset = 0x4, fixed_abs, tag = 'smem constant byte address 0x4 - core index']
  #allocation1 [shape = 'u32[144,128]{1,0:T(1,128)}', space=vmem, size = 0x12000, scoped, tag = 'internal scratch']
  %s0 = inlined_call_operand.vmem [shape: f32[8,16], index: 0, kind: input, shape index: {}]
  %s1 = inlined_call_operand.vmem [shape: bf16[16,32], index: 1, kind: input, shape index: {}]
  %s2 = inlined_call_operand.vmem [shape: f32[1,32], index: 2, kind: input, shape index: {}]
  %s3 = inlined_call_operand.vmem [shape: bf16[32,7], index: 3, kind: input, shape index: {}]
  %s4 = inlined_call_operand.vmem [shape: f32[1,7], index: 4, kind: input, shape index: {}]
  %s5 = inlined_call_operand.hbm [shape: f32[8,7], index: 5, kind: output, shape index: {}]
  %s6 = sld [smem:[#allocation0]]
  $region30: #{tpu_custom_call.1} parent=0
    _
  %s8 = ssub.s32 1, %s6
  %s9 = scalar_select 0, %s8, %s6
  $region1: #{tpu_custom_call.1} parent=0
    #allocation2 [shape = 'u8[4096]{0}', space=vmem, size = 0x1000, scoped, tag = 'output window, operand 0, single buffered']
    #allocation3 [shape = 's32[1]{0}', space=sflag, size = 0x4, scoped, tag = 'scoped memory for tpu_custom_call.1']
    %10 = vsyncpa [#allocation3], 0
    // Predicated region
    $region2: #{tpu_custom_call.1} parent=1 // pred_check
      _
    $region3: #{tpu_custom_call.1} parent=1 // pred_check_branch
      %12 = sbr.rel (0) target = $region5
    $region4: #{tpu_custom_call.1} parent=1 // pred_region
      _
    $region5: #{tpu_custom_call.1} parent=1 // pred_fallthru
      _
    // Predicated region
    $region6: #{tpu_custom_call.1} parent=1 // pred_check
      _
    $region7: #{tpu_custom_call.1} parent=1 // pred_check_branch
      %14 = sbr.rel (0) target = $region9
    $region8: #{tpu_custom_call.1} parent=1 // pred_region
      _
    $region9: #{tpu_custom_call.1} parent=1 // pred_fallthru
      _
    // Predicated region
    $region10: #{tpu_custom_call.1} parent=1 // pred_check
      _
    $region11: #{tpu_custom_call.1} parent=1 // pred_check_branch
      %16 = sbr.rel (0) target = $region13
    $region12: #{tpu_custom_call.1} parent=1 // pred_region
      _
    $region13: #{tpu_custom_call.1} parent=1 // pred_fallthru
      _
    // Predicated region
    $region14: #{tpu_custom_call.1} parent=1 // pred_check
      _
    $region15: #{tpu_custom_call.1} parent=1 // pred_check_branch
      %18 = sbr.rel (0) target = $region17
    $region16: #{tpu_custom_call.1} parent=1 // pred_region
      _
    $region17: #{tpu_custom_call.1} parent=1 // pred_fallthru
      _
    // Predicated region
    $region18: #{tpu_custom_call.1} parent=1 // pred_check
      _
    $region19: #{tpu_custom_call.1} parent=1 // pred_check_branch
      %20 = sbr.rel (0) target = $region21
    $region20: #{tpu_custom_call.1} parent=1 // pred_region
      _
    $region21: #{tpu_custom_call.1} parent=1 // pred_fallthru
      _
    %v22 = vld [vmem:[%s0] sm:$0xff]
    %v23 = vpack.c.bf16 %v22, %v22
    %v24 = vld [vmem:[%s1] sm:$0xf]
    %v25 = vld [vmem:[%s1 + $0x4] sm:$0xf]
    %v26 = vld [vmem:[%s2] sm:$0x1]
    %v28 = vlaneseq
    %v29 = vshrl.u32 %v28, 7
    %v30 = vsub.s32 0, %v29
    %v31 = vrot.slane %v26, %v30
    %v35 = vunpack.c.l.b16 %v24
    %v36 = vunpack.c.l.b16 %v25
    %v37 = vpack.c.b16 %v36, %v35
    %vm39 = vcmask 130048
    %v41 = vsel %vm39, %v23, 0
    %43 = vmatprep.subr.bf16.mxu0 0
    %44 = vmatpush1.bf16.msra.mxu0 %v37
    %45 = vmatprep.subr.bf16.mxu0 0
    %46 = vmatpush1.bf16.msra.mxu0 0
    %47 = vmatprep.subr.bf16.mxu0 0
    %48 = vmatpush1.bf16.msra.mxu0 0
    %49 = vmatprep.subr.bf16.mxu0 0
    %50 = vmatpush1.bf16.msra.mxu0 0
    %51 = vmatprep.subr.bf16.mxu0 0
    %52 = vmatpush1.bf16.msra.mxu0 0
    %53 = vmatprep.subr.bf16.mxu0 0
    %54 = vmatpush1.bf16.msra.mxu0 0
    %55 = vmatprep.subr.bf16.mxu0 0
    %56 = vmatpush1.bf16.msra.mxu0 0
    %57 = vmatprep.subr.bf16.mxu0 0
    %58 = vmatpush1.bf16.msra.mxu0 0
    %59 = vmatprep.subr.bf16.mxu0 0
    %60 = vmatpush1.bf16.msra.mxu0 0
    %61 = vmatprep.subr.bf16.mxu0 0
    %62 = vmatpush1.bf16.msra.mxu0 0
    %63 = vmatprep.subr.bf16.mxu0 0
    %64 = vmatpush1.bf16.msra.mxu0 0
    %65 = vmatprep.subr.bf16.mxu0 0
    %66 = vmatpush1.bf16.msra.mxu0 0
    %67 = vmatprep.subr.bf16.mxu0 0
    %68 = vmatpush1.bf16.msra.mxu0 0
    %69 = vmatprep.subr.bf16.mxu0 0
    %70 = vmatpush1.bf16.msra.mxu0 0
    %71 = vmatprep.subr.bf16.mxu0 0
    %72 = vmatpush1.bf16.msra.mxu0 0
    %73 = vmatprep.subr.bf16.mxu0 0
    %74 = vmatpush1.bf16.msra.mxu0 0
    %75 = vmatprep.mubr.bf16.mxu0 0
    %76 = vmatmul.mubr.bf16.gmra.mrb[0].mxu0 %v41
    %v77 = vpop.f32.mrb[0].mxu0
    %v78 = vadd.f32 %v31, %v77
    %v79 = vpop.f32.mrb[0].mxu0
    %v80 = vpop.f32.mrb[0].mxu0
    %v81 = vpop.f32.mrb[0].mxu0
    %82 = vdwg.mxu0
    %v83 = vmax.f32 %v78, 0.0
    %v84 = vpack.c.bf16 %v83, %v83
    %v85 = vld [vmem:[%s3] sm:$0xf]
    %v86 = vld [vmem:[%s3 + $0x4] sm:$0xf]
    %v87 = vld [vmem:[%s3 + $0x8] sm:$0xf]
    %v88 = vld [vmem:[%s3 + $0xc] sm:$0xf]
    %v89 = vld [vmem:[%s4] sm:$0x1]
    %v91 = vlaneseq
    %v92 = vshrl.u32 %v91, 7
    %v93 = vsub.s32 0, %v92
    %v94 = vrot.slane %v89, %v93
    %v100 = vunpack.c.l.b16 %v85
    %v101 = vunpack.c.l.b16 %v86
    %v102 = vunpack.c.l.b16 %v87
    %v103 = vunpack.c.l.b16 %v88
    %v104 = vpack.c.b16 %v101, %v100
    %v105 = vpack.c.b16 %v103, %v102
    %vm108 = vcmask 261120
    %v110 = vsel %vm108, %v84, 0
    %112 = vmatprep.subr.bf16.mxu0 0
    %113 = vmatpush1.bf16.msra.mxu0 %v104
    %114 = vmatprep.subr.bf16.mxu0 0
    %115 = vmatpush1.bf16.msra.mxu0 %v105
    %116 = vmatprep.subr.bf16.mxu0 0
    %117 = vmatpush1.bf16.msra.mxu0 0
    %118 = vmatprep.subr.bf16.mxu0 0
    %119 = vmatpush1.bf16.msra.mxu0 0
    %120 = vmatprep.subr.bf16.mxu0 0
    %121 = vmatpush1.bf16.msra.mxu0 0
    %122 = vmatprep.subr.bf16.mxu0 0
    %123 = vmatpush1.bf16.msra.mxu0 0
    %124 = vmatprep.subr.bf16.mxu0 0
    %125 = vmatpush1.bf16.msra.mxu0 0
    %126 = vmatprep.subr.bf16.mxu0 0
    %127 = vmatpush1.bf16.msra.mxu0 0
    %128 = vmatprep.subr.bf16.mxu0 0
    %129 = vmatpush1.bf16.msra.mxu0 0
    %130 = vmatprep.subr.bf16.mxu0 0
    %131 = vmatpush1.bf16.msra.mxu0 0
    %132 = vmatprep.subr.bf16.mxu0 0
    %133 = vmatpush1.bf16.msra.mxu0 0
    %134 = vmatprep.subr.bf16.mxu0 0
    %135 = vmatpush1.bf16.msra.mxu0 0
    %136 = vmatprep.subr.bf16.mxu0 0
    %137 = vmatpush1.bf16.msra.mxu0 0
    %138 = vmatprep.subr.bf16.mxu0 0
    %139 = vmatpush1.bf16.msra.mxu0 0
    %140 = vmatprep.subr.bf16.mxu0 0
    %141 = vmatpush1.bf16.msra.mxu0 0
    %142 = vmatprep.subr.bf16.mxu0 0
    %143 = vmatpush1.bf16.msra.mxu0 0
    %144 = vmatprep.mubr.bf16.mxu0 0
    %145 = vmatmul.mubr.bf16.gmra.mrb[0].mxu0 %v110
    %v146 = vpop.f32.mrb[0].mxu0
    %v147 = vadd.f32 %v94, %v146
    %v148 = vpop.f32.mrb[0].mxu0
    %v149 = vpop.f32.mrb[0].mxu0
    %v150 = vpop.f32.mrb[0].mxu0
    %151 = vdwg.mxu0
    %vm152 = vcmask 56320
    %v153 = vsel %vm152, %v147, -inf
    %154 = vmax.xlane.f32.xlu0 %v153
    %v155 = vpop.xlane.xlu0 %154
    %v156 = vsub.f32 %v147, %v155
    %v157 = vmul.f32 %v156, 1.442695
    %v158 = vpow.pop %v157
    %v159 = vsel %vm152, %v158, 0.0
    %160 = vadd.xlane.f32.xlu0 %v159
    %v161 = vpop.xlane.xlu0 %160
    %v162 = vlog2.pop %v161
    %v163 = vmul.f32 %v162, 0.6931472
    %v164 = vsub.f32 %v156, %v163
    %165 = vst.msk [vmem:[#allocation2] sm:$0xff] %vm152, %v164
    // Predicated region
    $region22: #{tpu_custom_call.1} parent=1 // pred_check
      _
    $region23: #{tpu_custom_call.1} parent=1 // pred_check_branch
      %167 = sbr.rel (0) target = $region25
    $region24: #{tpu_custom_call.1} parent=1 // pred_region
      %s169 = ssub.s32 128, 128
      %170 = vsyncadd [#allocation3], %s169
      %s172 = sshll.u32 [#allocation2], 4
      %s173 = int_to_ptr.vmem [resolvable:$true] %s172
      %175 = dma.vmem_to_hbm [thread:$0]  %s173, 128, %s5, [#allocation3]
    $region25: #{tpu_custom_call.1} parent=1 // pred_fallthru
      _
    // Predicated region
    $region26: #{tpu_custom_call.1} parent=1 // pred_check
      _
    $region27: #{tpu_custom_call.1} parent=1 // pred_check_branch
      %177 = sbr.rel (0) target = $region29
    $region28: #{tpu_custom_call.1} parent=1 // pred_region
      %178 = dma.done [#allocation3], 128
    $region29: #{tpu_custom_call.1} parent=1 // pred_fallthru
      _
    %179 = vsyncpa [#allocation3], 1

</llo_original>
